<compile_context>
chip_gen: v7x
topology: tpu7x:2x2x1
jax: 0.10.0
libtpu: 0.0.40
codegen_flags: <defaults>
</compile_context>

<pallas_src>
import math
import functools

import jax
import jax.numpy as jnp
from jax.experimental import pallas as pl
from jax.experimental.pallas import tpu as pltpu


def _head_linear_kernel(x_ref, w_ref, b_ref, o_ref):
    # x_ref: (TB, G*d_in_h)          one batch tile, one head-group's columns
    # w_ref: (G*d_in_h, G*d_out_h)   block-diagonal packed weights of the group
    # b_ref: (1, G*d_out_h)          that group's bias slice
    # o_ref: (TB, G*d_out_h)
    acc = jnp.dot(x_ref[...], w_ref[...], preferred_element_type=jnp.float32)
    o_ref[...] = (acc + b_ref[...]).astype(o_ref.dtype)


def _choose_head_group(nb_head, d_in_h, d_out_h):
    """Smallest head-group size G (dividing nb_head) whose grouped input and
    output widths are lane-aligned (multiples of 128).  Falls back to all
    heads in one group, where the blocks equal the full array dims (always a
    legal BlockSpec)."""
    for g in range(1, nb_head):
        if nb_head % g == 0 and (g * d_in_h) % 128 == 0 and (g * d_out_h) % 128 == 0:
            return g
    return nb_head


def _choose_batch_tile(batch, gin, gout, bytes_per_elem, budget_bytes=8 * 1024 * 1024):
    """Largest batch tile whose double-buffered footprint stays under a small
    VMEM budget (fits v5e's 16 MiB scoped default and v7x's 64 MiB VMEM)."""
    if batch <= 8:
        return batch
    for tb in (1024, 512, 256, 128, 64, 32, 16, 8):
        if tb > batch:
            continue
        footprint = 2 * bytes_per_elem * (tb * gin + tb * gout) + 2 * 4 * gin * gout
        if footprint <= budget_bytes:
            return tb
    return 8


@functools.partial(jax.jit, static_argnames=("nb_head", "compute_dtype"))
def head_linear_forward(x, weights, bias, permutation, nb_head, compute_dtype=None):
    """x: (B, in_dim); weights: (nb_head, d_in_h, d_out_h); bias: (out_dim,)."""
    B, in_dim = x.shape
    _, d_in_h, d_out_h = weights.shape
    out_dim = nb_head * d_out_h

    G = _choose_head_group(nb_head, d_in_h, d_out_h)
    n_groups = nb_head // G
    gin, gout = G * d_in_h, G * d_out_h

    in_dtype = x.dtype if compute_dtype is None else compute_dtype

    # Pack each group's per-head weights into a block-diagonal
    # (G*d_in_h, G*d_out_h) matrix (one-off pass over the small weights); the
    # kernel body then does a single lane-dense MXU matmul per block.
    w4 = weights.reshape(n_groups, G, d_in_h, d_out_h)
    eye = jnp.eye(G, dtype=weights.dtype)
    w_grp = jnp.einsum("ngij,gh->ngihj", w4, eye).reshape(n_groups, gin, gout)

    if n_groups == 1:
        # All heads in one group: fold the column permutation into the dense
        # block-diagonal weight (x[:, perm] @ W == x @ W[argsort(perm)]) so
        # the activations never take an extra gather pass through HBM.
        inv_perm = jnp.argsort(permutation)
        w_grp = w_grp[:, inv_perm, :]
        x_in = x
    else:
        # TODO(synk): this column gather is one extra HBM pass over x; it could
        # be removed via allow_input_fusion or by caching the permuted layout.
        x_in = jnp.take(x, permutation, axis=1)

    x_in = x_in.astype(in_dtype)
    w_grp = w_grp.astype(in_dtype)
    bias2d = bias.reshape(1, out_dim).astype(jnp.float32)

    TB = _choose_batch_tile(B, gin, gout, jnp.dtype(in_dtype).itemsize)
    grid = (n_groups, pl.cdiv(B, TB))  # group outer, batch inner -> weight reuse

    out = pl.pallas_call(
        _head_linear_kernel,
        out_shape=jax.ShapeDtypeStruct((B, out_dim), x.dtype),
        grid=grid,
        in_specs=[
            pl.BlockSpec((TB, gin), lambda g, b: (b, g)),            # x columns of group g
            pl.BlockSpec((None, gin, gout), lambda g, b: (g, 0, 0)),  # weights: b-independent
            pl.BlockSpec((1, gout), lambda g, b: (0, g)),             # bias slice of group g
        ],
        out_specs=pl.BlockSpec((TB, gout), lambda g, b: (b, g)),
        compiler_params=pltpu.CompilerParams(
            dimension_semantics=("parallel", "parallel")),
    )(x_in, w_grp, bias2d)
    return out


def init_head_linear_params(key, in_dim, out_dim, nb_head):
    """Deterministic init mirroring the PyTorch reset_parameters()."""
    d_in_h = in_dim // nb_head
    d_out_h = out_dim // nb_head
    k_w, k_b, k_p = jax.random.split(key, 3)

    # kaiming_uniform_(a=sqrt(5)) on a (nb_head, d_in_h, d_out_h) tensor:
    # fan_in = size(1) * prod(sizes[2:]) = d_in_h * d_out_h
    fan_in = d_in_h * d_out_h
    gain = math.sqrt(2.0 / (1.0 + 5.0))           # a = sqrt(5)
    w_bound = gain * math.sqrt(3.0 / fan_in)
    weights = jax.random.uniform(
        k_w, (nb_head, d_in_h, d_out_h), jnp.float32, -w_bound, w_bound)

    b_bound = 1.0 / math.sqrt(fan_in)
    bias = jax.random.uniform(k_b, (out_dim,), jnp.float32, -b_bound, b_bound)

    permutation = jax.random.permutation(k_p, in_dim)
    return weights, bias, permutation


if __name__ == "__main__":
    def reference(x, weights, bias, permutation, nb_head):
        B, in_dim = x.shape
        d_out_h = weights.shape[-1]
        x_perm = jnp.take(x, permutation, axis=1).reshape(B, nb_head, in_dim // nb_head)
        out = jnp.einsum("bmd,mdk->bmk", x_perm, weights)
        return out.reshape(B, nb_head * d_out_h) + bias[None, :]

    key = jax.random.PRNGKey(0)

    # Config 1: tiny heads -> single dense block-diagonal matmul, permutation
    #           folded into the weights (no activation gather pass).
    # Config 2: lane-aligned head groups -> (groups, batch-tiles) grid.
    for (B, in_dim, out_dim, nb_head) in ((8, 32, 32, 4), (32, 256, 256, 8)):
        key, k_x, k_p = jax.random.split(key, 3)
        x = jax.random.normal(k_x, (B, in_dim), dtype=jnp.float32)
        weights, bias, permutation = init_head_linear_params(
            k_p, in_dim, out_dim, nb_head)

        out = head_linear_forward(x, weights, bias, permutation, nb_head=nb_head)
        out = jax.block_until_ready(out)

        ref = reference(x, weights, bias, permutation, nb_head)
        assert out.shape == (B, out_dim)
        assert jnp.allclose(out, ref, atol=1e-5, rtol=1e-5), (
            float(jnp.max(jnp.abs(out - ref))))

    print("KERNEL_OK")
</pallas_src>

<mosaic_0001>
module attributes {stable_mosaic.version = 11 : i64} {
  func.func @_head_linear_kernel(%arg0: i32, %arg1: i32, %arg2: memref<8x32xf32, #tpu.memory_space<vmem>>, %arg3: memref<1x32x32xf32, #tpu.memory_space<vmem>>, %arg4: memref<1x32xf32, #tpu.memory_space<vmem>>, %arg5: memref<8x32xf32, #tpu.memory_space<vmem>>) attributes {dimension_semantics = [#tpu.dimension_semantics<parallel>, #tpu.dimension_semantics<parallel>], iteration_bounds = array<i64: 1, 1>, scalar_prefetch = 0 : i64, scratch_operands = 0 : i64, tpu.core_type = #tpu.core_type<tc>, window_params = [{transform_indices = @transform_0, window_bounds = array<i64: 8, 32>}, {transform_indices = @transform_1, window_bounds = array<i64: 1, 32, 32>}, {transform_indices = @transform_2, window_bounds = array<i64: 1, 32>}, {transform_indices = @transform_3, window_bounds = array<i64: 8, 32>}]} {
    %c0 = arith.constant 0 : index
    %c0_0 = arith.constant 0 : index
    %0 = vector.load %arg2[%c0, %c0_0] : memref<8x32xf32, #tpu.memory_space<vmem>>, vector<8x32xf32>
    %c0_1 = arith.constant 0 : index
    %c0_2 = arith.constant 0 : index
    %c0_3 = arith.constant 0 : index
    %1 = vector.load %arg3[%c0_1, %c0_2, %c0_3] : memref<1x32x32xf32, #tpu.memory_space<vmem>>, vector<1x32x32xf32>
    %2 = vector.shape_cast %1 : vector<1x32x32xf32> to vector<32x32xf32>
    %cst = arith.constant dense<0.000000e+00> : vector<8x32xf32>
    %3 = tpu.matmul %0, %2, %cst {dimension_numbers = #tpu.dot_dimension_numbers<[1], [0], [0], [1], [0, 0, 1, 1], [], []>} : vector<8x32xf32>, vector<32x32xf32>, vector<8x32xf32> -> vector<8x32xf32>
    %c0_4 = arith.constant 0 : index
    %c0_5 = arith.constant 0 : index
    %4 = vector.load %arg4[%c0_4, %c0_5] : memref<1x32xf32, #tpu.memory_space<vmem>>, vector<1x32xf32>
    %5 = vector.broadcast %4 : vector<1x32xf32> to vector<8x32xf32>
    %6 = arith.addf %3, %5 : vector<8x32xf32>
    %c0_6 = arith.constant 0 : index
    %c0_7 = arith.constant 0 : index
    %7 = vector.load %arg5[%c0_6, %c0_7] : memref<8x32xf32, #tpu.memory_space<vmem>>, vector<8x32xf32>
    tpu.vector_store %arg5[%c0_6, %c0_7], %6 {strides = array<i32>} : memref<8x32xf32, #tpu.memory_space<vmem>>, vector<8x32xf32>,
    return
  }
  func.func @transform_0(%arg0: i32, %arg1: i32) -> (i32, i32) {
    %c0_i32 = arith.constant 0 : i32
    return %arg1, %arg0 : i32, i32
  }
  func.func @transform_1(%arg0: i32, %arg1: i32) -> (i32, i32, i32) {
    %c0_i32 = arith.constant 0 : i32
    %c0_i32_0 = arith.constant 0 : i32
    %c0_i32_1 = arith.constant 0 : i32
    return %arg0, %c0_i32, %c0_i32_0 : i32, i32, i32
  }
  func.func @transform_2(%arg0: i32, %arg1: i32) -> (i32, i32) {
    %c0_i32 = arith.constant 0 : i32
    %c0_i32_0 = arith.constant 0 : i32
    return %c0_i32, %arg0 : i32, i32
  }
  func.func @transform_3(%arg0: i32, %arg1: i32) -> (i32, i32) {
    %c0_i32 = arith.constant 0 : i32
    return %arg1, %arg0 : i32, i32
  }
}

</mosaic_0001>

<llo_original>
// kernel: head_linear_forward.1
$region0: #{head_linear_forward.1}
  #allocation0 [shape = 'u32[]', space=smem, size = 0x4, offset = 0x4, fixed_abs, tag = 'smem constant byte address 0x4 - core index']
  #allocation1 [shape = 'u32[144,128]{1,0:T(1,128)}', space=vmem, size = 0x12000, scoped, tag = 'internal scratch']
  %s0 = inlined_call_operand.vmem [shape: f32[8,32], index: 0, kind: input, shape index: {}]
  %s1 = inlined_call_operand.vmem [shape: f32[1,32,32], index: 1, kind: input, shape index: {}]
  %s2 = inlined_call_operand.vmem [shape: f32[1,32], index: 2, kind: input, shape index: {}]
  %s3 = inlined_call_operand.hbm [shape: f32[8,32], index: 3, kind: output, shape index: {}]
  %s4 = sld [smem:[#allocation0]]
  $region22: #{head_linear_forward.1} parent=0
    _
  %s6 = ssub.s32 1, %s4
  %s7 = scalar_select 0, %s6, %s4
  $region1: #{head_linear_forward.1} parent=0
    #allocation2 [shape = 'u8[4096]{0}', space=vmem, size = 0x1000, scoped, tag = 'output window, operand 0, single buffered']
    #allocation3 [shape = 's32[1]{0}', space=sflag, size = 0x4, scoped, tag = 'scoped memory for head_linear_forward.1']
    %8 = vsyncpa [#allocation3], 0
    // Predicated region
    $region2: #{head_linear_forward.1} parent=1 // pred_check
      _
    $region3: #{head_linear_forward.1} parent=1 // pred_check_branch
      %10 = sbr.rel (0) target = $region5
    $region4: #{head_linear_forward.1} parent=1 // pred_region
      _
    $region5: #{head_linear_forward.1} parent=1 // pred_fallthru
      _
    // Predicated region
    $region6: #{head_linear_forward.1} parent=1 // pred_check
      _
    $region7: #{head_linear_forward.1} parent=1 // pred_check_branch
      %12 = sbr.rel (0) target = $region9
    $region8: #{head_linear_forward.1} parent=1 // pred_region
      _
    $region9: #{head_linear_forward.1} parent=1 // pred_fallthru
      _
    // Predicated region
    $region10: #{head_linear_forward.1} parent=1 // pred_check
      _
    $region11: #{head_linear_forward.1} parent=1 // pred_check_branch
      %14 = sbr.rel (0) target = $region13
    $region12: #{head_linear_forward.1} parent=1 // pred_region
      _
    $region13: #{head_linear_forward.1} parent=1 // pred_fallthru
      _
    %v15 = vld [vmem:[%s0] sm:$0xff]
    %v16 = vld [vmem:[%s1] sm:$0xff]
    %v17 = vld [vmem:[%s1 + $0x8] sm:$0xff]
    %v18 = vld [vmem:[%s1 + $0x10] sm:$0xff]
    %v19 = vld [vmem:[%s1 + $0x18] sm:$0xff]
    %v20 = vld [vmem:[%s2] sm:$0x1]
    %v22 = vlaneseq
    %v23 = vshrl.u32 %v22, 7
    %v24 = vsub.s32 0, %v23
    %v25 = vrot.slane %v20, %v24
    %vm27 = vcmask 261120
    %v29 = vsel %vm27, %v15, 0
    %31 = vmatprep.subr.mxu0 0.0
    %32 = vmatpush1.msra.mxu0 %v16
    %33 = vmatprep.subr.mxu0 0.0
    %34 = vmatpush1.msra.mxu0 %v17
    %35 = vmatprep.subr.mxu0 0.0
    %36 = vmatpush1.msra.mxu0 %v18
    %37 = vmatprep.subr.mxu0 0.0
    %38 = vmatpush1.msra.mxu0 %v19
    %39 = vmatprep.subr.mxu0 0.0
    %40 = vmatpush1.msra.mxu0 0.0
    %41 = vmatprep.subr.mxu0 0.0
    %42 = vmatpush1.msra.mxu0 0.0
    %43 = vmatprep.subr.mxu0 0.0
    %44 = vmatpush1.msra.mxu0 0.0
    %45 = vmatprep.subr.mxu0 0.0
    %46 = vmatpush1.msra.mxu0 0.0
    %47 = vmatprep.subr.mxu0 0.0
    %48 = vmatpush1.msra.mxu0 0.0
    %49 = vmatprep.subr.mxu0 0.0
    %50 = vmatpush1.msra.mxu0 0.0
    %51 = vmatprep.subr.mxu0 0.0
    %52 = vmatpush1.msra.mxu0 0.0
    %53 = vmatprep.subr.mxu0 0.0
    %54 = vmatpush1.msra.mxu0 0.0
    %55 = vmatprep.subr.mxu0 0.0
    %56 = vmatpush1.msra.mxu0 0.0
    %57 = vmatprep.subr.mxu0 0.0
    %58 = vmatpush1.msra.mxu0 0.0
    %59 = vmatprep.subr.mxu0 0.0
    %60 = vmatpush1.msra.mxu0 0.0
    %61 = vmatprep.subr.mxu0 0.0
    %62 = vmatpush1.msra.mxu0 0.0
    %63 = vmatprep.subr.mxu0 0.0
    %64 = vmatpush1.msra.mxu0 0.0
    %65 = vmatprep.subr.mxu0 0.0
    %66 = vmatpush1.msra.mxu0 0.0
    %67 = vmatprep.subr.mxu0 0.0
    %68 = vmatpush1.msra.mxu0 0.0
    %69 = vmatprep.subr.mxu0 0.0
    %70 = vmatpush1.msra.mxu0 0.0
    %71 = vmatprep.subr.mxu0 0.0
    %72 = vmatpush1.msra.mxu0 0.0
    %73 = vmatprep.subr.mxu0 0.0
    %74 = vmatpush1.msra.mxu0 0.0
    %75 = vmatprep.subr.mxu0 0.0
    %76 = vmatpush1.msra.mxu0 0.0
    %77 = vmatprep.subr.mxu0 0.0
    %78 = vmatpush1.msra.mxu0 0.0
    %79 = vmatprep.subr.mxu0 0.0
    %80 = vmatpush1.msra.mxu0 0.0
    %81 = vmatprep.subr.mxu0 0.0
    %82 = vmatpush1.msra.mxu0 0.0
    %83 = vmatprep.subr.mxu0 0.0
    %84 = vmatpush1.msra.mxu0 0.0
    %85 = vmatprep.subr.mxu0 0.0
    %86 = vmatpush1.msra.mxu0 0.0
    %87 = vmatprep.subr.mxu0 0.0
    %88 = vmatpush1.msra.mxu0 0.0
    %89 = vmatprep.subr.mxu0 0.0
    %90 = vmatpush1.msra.mxu0 0.0
    %91 = vmatprep.subr.mxu0 0.0
    %92 = vmatpush1.msra.mxu0 0.0
    %93 = vmatprep.subr.mxu0 0.0
    %94 = vmatpush1.msra.mxu0 0.0
    %95 = vmatprep.mubr.f32.mxu0 0.0
    %96 = vmatmul.mubr.f32.gmra.mrb[0].mxu0 %v29
    %v97 = vpop.f32.mrb[0].mxu0
    %v98 = vadd.f32 %v25, %v97
    %v99 = vpop.f32.mrb[0].mxu0
    %100 = vdwg.mxu0
    %101 = vst.msk [vmem:[#allocation2] sm:$0xff] %vm27, %v98
    // Predicated region
    $region14: #{head_linear_forward.1} parent=1 // pred_check
      _
    $region15: #{head_linear_forward.1} parent=1 // pred_check_branch
      %103 = sbr.rel (0) target = $region17
    $region16: #{head_linear_forward.1} parent=1 // pred_region
      %s105 = ssub.s32 128, 128
      %106 = vsyncadd [#allocation3], %s105
      %s108 = sshll.u32 [#allocation2], 4
      %s109 = int_to_ptr.vmem [resolvable:$true] %s108
      %111 = dma.vmem_to_hbm [thread:$0]  %s109, 128, %s3, [#allocation3]
    $region17: #{head_linear_forward.1} parent=1 // pred_fallthru
      _
    // Predicated region
    $region18: #{head_linear_forward.1} parent=1 // pred_check
      _
    $region19: #{head_linear_forward.1} parent=1 // pred_check_branch
      %113 = sbr.rel (0) target = $region21
    $region20: #{head_linear_forward.1} parent=1 // pred_region
      %114 = dma.done [#allocation3], 128
    $region21: #{head_linear_forward.1} parent=1 // pred_fallthru
      _
    %115 = vsyncpa [#allocation3], 1

</llo_original>
